<compile_context>
chip_gen: v7x
topology: tpu7x:2x2x1
jax: 0.10.0
libtpu: 0.0.40
codegen_flags: <defaults>
</compile_context>

<pallas_src>
import jax
import jax.numpy as jnp
from jax.experimental import pallas as pl
from jax.experimental.pallas import tpu as pltpu


def _round_up(x, m):
    return ((x + m - 1) // m) * m


# ------------------------------- kernel ------------------------------------ #
def _sdne_kernel(x_ref, w_enc_ref, b_enc_ref, w_dec_ref, b_dec_ref,
                 diff_ref, y_ref):
    x = x_ref[...]  # (tile_n, F) f32 tile

    # encoder collapsed into one affine map: y = x @ W_enc + b_enc
    y = jnp.dot(x, w_enc_ref[...], preferred_element_type=jnp.float32) + b_enc_ref[...]
    y_ref[...] = y.astype(y_ref.dtype)

    # decoder collapsed into one affine map (Dropout is identity in eval mode)
    x_hat = jnp.dot(y, w_dec_ref[...], preferred_element_type=jnp.float32) + b_dec_ref[...]

    diff_ref[...] = (x - x_hat).astype(diff_ref.dtype)


# ------------------------------ tiling helpers ------------------------------- #
def _vmem_working_set_bytes(tile_n, f, d):
    # double-buffered x / diff / y tiles + double-buffered (tiny) weights & biases
    per_row = 2 * 4 * (2 * f + d)
    fixed = 2 * 4 * (2 * f * d + f + d)
    return per_row * tile_n + fixed


def _pick_tile_n(n_rows, f, d, vmem_budget_bytes=48 << 20):
    """Largest (8-aligned) row tile that fits the v7x-safe VMEM budget, capped at
    1024 rows, and capped so the row grid has >= 2 steps when possible."""
    if n_rows <= 8:
        return n_rows  # full-extent block (legal even if not a multiple of 8)
    per_row = 2 * 4 * (2 * f + d)
    fixed = 2 * 4 * (2 * f * d + f + d)
    cap = max(8, (vmem_budget_bytes - fixed) // per_row)
    tile_n = int(min(1024, cap))
    tile_n = max(8, tile_n - (tile_n % 8))
    # >= 2 grid steps so v7x's second TensorCore isn't idle.
    half = _round_up((n_rows + 1) // 2, 8)
    return min(tile_n, half)


# ------------------------------- wrapper ------------------------------------ #
def _compose_affine(params):
    """Collapse a chain of (W, b) affine maps (W stored [in, out]) into one (W, b)."""
    w, b = params[0]
    w = w.astype(jnp.float32)
    b = b.astype(jnp.float32)
    for w2, b2 in params[1:]:
        w2 = w2.astype(jnp.float32)
        b = b @ w2 + b2.astype(jnp.float32)
        w = w @ w2
    return w, b


@jax.jit
def sdne_forward(x, enc_params, dec_params):
    """Returns (x - x_hat, y), matching PyTorch SDNE.forward (eval mode)."""
    n_rows, in_dim = x.shape
    emb_dim = enc_params[-1][0].shape[1]

    # ---- collapse the affine chains once per call (weights are tiny) ----
    w_enc, b_enc = _compose_affine(enc_params)   # [in_dim, emb_dim], [1, emb_dim]
    w_dec, b_dec = _compose_affine(dec_params)   # [emb_dim, in_dim], [1, in_dim]

    x_p = x.astype(jnp.float32)

    # ---- row tiling: no wrapper-side padding, cdiv grid, VMEM-budgeted tile ----
    tile_n = _pick_tile_n(n_rows, in_dim, emb_dim)
    grid = (pl.cdiv(n_rows, tile_n),)

    working_set = _vmem_working_set_bytes(tile_n, in_dim, emb_dim)
    vmem_limit = int(min(64 << 20, max(32 << 20, working_set + (16 << 20))))

    cost = pl.CostEstimate(
        flops=4 * n_rows * in_dim * emb_dim,          # two matmuls per row tile
        transcendentals=0,
        bytes_accessed=4 * (2 * n_rows * in_dim + n_rows * emb_dim
                            + 2 * in_dim * emb_dim + in_dim + emb_dim),
    )

    diff, y = pl.pallas_call(
        _sdne_kernel,
        out_shape=(
            jax.ShapeDtypeStruct((n_rows, in_dim), jnp.float32),   # x - x_hat (true shape)
            jax.ShapeDtypeStruct((n_rows, emb_dim), jnp.float32),  # y         (true shape)
        ),
        grid=grid,
        in_specs=[
            pl.BlockSpec((tile_n, in_dim), lambda i: (i, 0)),      # x tile (streamed)
            pl.BlockSpec((in_dim, emb_dim), lambda i: (0, 0)),     # W_enc (resident)
            pl.BlockSpec((1, emb_dim), lambda i: (0, 0)),          # b_enc (resident)
            pl.BlockSpec((emb_dim, in_dim), lambda i: (0, 0)),     # W_dec (resident)
            pl.BlockSpec((1, in_dim), lambda i: (0, 0)),           # b_dec (resident)
        ],
        out_specs=(
            pl.BlockSpec((tile_n, in_dim), lambda i: (i, 0)),
            pl.BlockSpec((tile_n, emb_dim), lambda i: (i, 0)),
        ),
        compiler_params=pltpu.CompilerParams(
            dimension_semantics=("parallel",),
            vmem_limit_bytes=vmem_limit,
        ),
        cost_estimate=cost,
    )(x_p, w_enc, b_enc, w_dec, b_dec)

    return diff, y


# ------------------------------ params / reference --------------------------- #
def sdne_init_params(key, num_units, k, d, dtype=jnp.float32):
    """Deterministic init matching the layer shapes of SDNE.__init__.

    Each layer is (W, b) with W stored as [in_dim, out_dim] (pre-transposed for the
    kernel) and b as [1, out_dim].
    """
    enc_dims = [(num_units[0], num_units[1])]
    for i in range(1, k):
        enc_dims.append((num_units[i], num_units[i + 1]))
    enc_dims.append((num_units[k], d))

    dec_dims = [(d, num_units[k])]
    for i in range(0, k):
        dec_dims.append((num_units[k - i], num_units[k - i - 1]))

    def init_layer(key, in_dim, out_dim):
        kw, kb = jax.random.split(key)
        bound = 1.0 / jnp.sqrt(jnp.asarray(in_dim, jnp.float32))
        w = jax.random.uniform(kw, (in_dim, out_dim), dtype, -bound, bound)
        b = jax.random.uniform(kb, (1, out_dim), dtype, -bound, bound)
        return w, b

    keys = jax.random.split(key, len(enc_dims) + len(dec_dims))
    enc_params = [init_layer(keys[i], *enc_dims[i]) for i in range(len(enc_dims))]
    dec_params = [
        init_layer(keys[len(enc_dims) + i], *dec_dims[i]) for i in range(len(dec_dims))
    ]
    return enc_params, dec_params


def sdne_reference(x, enc_params, dec_params):
    """Pure-JAX layer-by-layer reference for correctness checking."""
    h = x.astype(jnp.float32)
    for w, b in enc_params:
        h = h @ w.astype(jnp.float32) + b.astype(jnp.float32)
    y = h
    for w, b in dec_params:
        h = h @ w.astype(jnp.float32) + b.astype(jnp.float32)
    return x.astype(jnp.float32) - h, y


# ---------------------------------- main ------------------------------------ #
if __name__ == "__main__":
    # SDNE(num_units=[128, 64, 32], k=2, d=16)
    # Encoder: 128 -> 64 -> 32 -> 16 ; Decoder: 16 -> 32 -> 64 -> 128
    num_units = [128, 64, 32]
    k = 2
    d = 16
    n_nodes = 16  # small batch of node feature rows (-> tile_n=8, grid=(2,))

    key = jax.random.PRNGKey(0)
    k_x, k_params = jax.random.split(key)
    x = jax.random.normal(k_x, (n_nodes, num_units[0]), jnp.float32)
    enc_params, dec_params = sdne_init_params(k_params, num_units, k, d)

    diff, y = sdne_forward(x, enc_params, dec_params)
    diff, y = jax.block_until_ready((diff, y))

    diff_ref, y_ref = sdne_reference(x, enc_params, dec_params)
    assert diff.shape == (n_nodes, num_units[0]) and y.shape == (n_nodes, d)
    assert jnp.allclose(diff, diff_ref, atol=1e-3, rtol=1e-3)
    assert jnp.allclose(y, y_ref, atol=1e-3, rtol=1e-3)

    print("KERNEL_OK")
</pallas_src>

<mosaic_0001>
module attributes {stable_mosaic.version = 11 : i64} {
  func.func @_sdne_kernel(%arg0: i32, %arg1: memref<8x128xf32, #tpu.memory_space<vmem>>, %arg2: memref<128x16xf32, #tpu.memory_space<vmem>>, %arg3: memref<1x16xf32, #tpu.memory_space<vmem>>, %arg4: memref<16x128xf32, #tpu.memory_space<vmem>>, %arg5: memref<1x128xf32, #tpu.memory_space<vmem>>, %arg6: memref<8x128xf32, #tpu.memory_space<vmem>>, %arg7: memref<8x16xf32, #tpu.memory_space<vmem>>) attributes {dimension_semantics = [#tpu.dimension_semantics<parallel>], iteration_bounds = array<i64: 2>, scalar_prefetch = 0 : i64, scratch_operands = 0 : i64, tpu.core_type = #tpu.core_type<tc>, window_params = [{transform_indices = @transform_0, window_bounds = array<i64: 8, 128>}, {pipeline_mode = #tpu.pipeline_mode<synchronous>, transform_indices = @transform_1, window_bounds = array<i64: 128, 16>}, {pipeline_mode = #tpu.pipeline_mode<synchronous>, transform_indices = @transform_2, window_bounds = array<i64: 1, 16>}, {pipeline_mode = #tpu.pipeline_mode<synchronous>, transform_indices = @transform_3, window_bounds = array<i64: 16, 128>}, {pipeline_mode = #tpu.pipeline_mode<synchronous>, transform_indices = @transform_4, window_bounds = array<i64: 1, 128>}, {transform_indices = @transform_5, window_bounds = array<i64: 8, 128>}, {transform_indices = @transform_6, window_bounds = array<i64: 8, 16>}]} {
    %c0 = arith.constant 0 : index
    %c0_0 = arith.constant 0 : index
    %0 = vector.load %arg1[%c0, %c0_0] : memref<8x128xf32, #tpu.memory_space<vmem>>, vector<8x128xf32>
    %c0_1 = arith.constant 0 : index
    %c0_2 = arith.constant 0 : index
    %1 = vector.load %arg2[%c0_1, %c0_2] : memref<128x16xf32, #tpu.memory_space<vmem>>, vector<128x16xf32>
    %cst = arith.constant dense<0.000000e+00> : vector<8x16xf32>
    %2 = tpu.matmul %0, %1, %cst {dimension_numbers = #tpu.dot_dimension_numbers<[1], [0], [0], [1], [0, 0, 1, 1], [], []>} : vector<8x128xf32>, vector<128x16xf32>, vector<8x16xf32> -> vector<8x16xf32>
    %c0_3 = arith.constant 0 : index
    %c0_4 = arith.constant 0 : index
    %3 = vector.load %arg3[%c0_3, %c0_4] : memref<1x16xf32, #tpu.memory_space<vmem>>, vector<1x16xf32>
    %4 = vector.broadcast %3 : vector<1x16xf32> to vector<8x16xf32>
    %5 = arith.addf %2, %4 : vector<8x16xf32>
    %c0_5 = arith.constant 0 : index
    %c0_6 = arith.constant 0 : index
    %6 = vector.load %arg7[%c0_5, %c0_6] : memref<8x16xf32, #tpu.memory_space<vmem>>, vector<8x16xf32>
    tpu.vector_store %arg7[%c0_5, %c0_6], %5 {strides = array<i32>} : memref<8x16xf32, #tpu.memory_space<vmem>>, vector<8x16xf32>,
    %c0_7 = arith.constant 0 : index
    %c0_8 = arith.constant 0 : index
    %7 = vector.load %arg4[%c0_7, %c0_8] : memref<16x128xf32, #tpu.memory_space<vmem>>, vector<16x128xf32>
    %cst_9 = arith.constant dense<0.000000e+00> : vector<8x128xf32>
    %8 = tpu.matmul %5, %7, %cst_9 {dimension_numbers = #tpu.dot_dimension_numbers<[1], [0], [0], [1], [0, 0, 1, 1], [], []>} : vector<8x16xf32>, vector<16x128xf32>, vector<8x128xf32> -> vector<8x128xf32>
    %c0_10 = arith.constant 0 : index
    %c0_11 = arith.constant 0 : index
    %9 = vector.load %arg5[%c0_10, %c0_11] : memref<1x128xf32, #tpu.memory_space<vmem>>, vector<1x128xf32>
    %10 = vector.broadcast %9 : vector<1x128xf32> to vector<8x128xf32>
    %11 = arith.addf %8, %10 : vector<8x128xf32>
    %12 = arith.subf %0, %11 : vector<8x128xf32>
    %c0_12 = arith.constant 0 : index
    %c0_13 = arith.constant 0 : index
    %13 = vector.load %arg6[%c0_12, %c0_13] : memref<8x128xf32, #tpu.memory_space<vmem>>, vector<8x128xf32>
    tpu.vector_store %arg6[%c0_12, %c0_13], %12 {strides = array<i32>} : memref<8x128xf32, #tpu.memory_space<vmem>>, vector<8x128xf32>,
    return
  }
  func.func @transform_0(%arg0: i32) -> (i32, i32) {
    %c0_i32 = arith.constant 0 : i32
    %c0_i32_0 = arith.constant 0 : i32
    return %arg0, %c0_i32 : i32, i32
  }
  func.func @transform_1(%arg0: i32) -> (i32, i32) {
    %c0_i32 = arith.constant 0 : i32
    %c0_i32_0 = arith.constant 0 : i32
    %c0_i32_1 = arith.constant 0 : i32
    return %c0_i32, %c0_i32_0 : i32, i32
  }
  func.func @transform_2(%arg0: i32) -> (i32, i32) {
    %c0_i32 = arith.constant 0 : i32
    %c0_i32_0 = arith.constant 0 : i32
    %c0_i32_1 = arith.constant 0 : i32
    return %c0_i32, %c0_i32_0 : i32, i32
  }
  func.func @transform_3(%arg0: i32) -> (i32, i32) {
    %c0_i32 = arith.constant 0 : i32
    %c0_i32_0 = arith.constant 0 : i32
    %c0_i32_1 = arith.constant 0 : i32
    return %c0_i32, %c0_i32_0 : i32, i32
  }
  func.func @transform_4(%arg0: i32) -> (i32, i32) {
    %c0_i32 = arith.constant 0 : i32
    %c0_i32_0 = arith.constant 0 : i32
    %c0_i32_1 = arith.constant 0 : i32
    return %c0_i32, %c0_i32_0 : i32, i32
  }
  func.func @transform_5(%arg0: i32) -> (i32, i32) {
    %c0_i32 = arith.constant 0 : i32
    %c0_i32_0 = arith.constant 0 : i32
    return %arg0, %c0_i32 : i32, i32
  }
  func.func @transform_6(%arg0: i32) -> (i32, i32) {
    %c0_i32 = arith.constant 0 : i32
    %c0_i32_0 = arith.constant 0 : i32
    return %arg0, %c0_i32 : i32, i32
  }
}

</mosaic_0001>

<llo_original>
// kernel: sdne_forward.1
$region0: #{sdne_forward.1}
  #allocation0 [shape = 'u32[]', space=smem, size = 0x4, offset = 0x4, fixed_abs, tag = 'smem constant byte address 0x4 - core index']
  #allocation1 [shape = 'u32[144,128]{1,0:T(1,128)}', space=vmem, size = 0x12000, scoped, tag = 'internal scratch']
  %s0 = inlined_call_operand.vmem [shape: f32[16,128], index: 0, kind: input, shape index: {}]
  %s1 = inlined_call_operand.vmem [shape: f32[128,16], index: 1, kind: input, shape index: {}]
  %s2 = inlined_call_operand.vmem [shape: f32[1,16], index: 2, kind: input, shape index: {}]
  %s3 = inlined_call_operand.vmem [shape: f32[16,128], index: 3, kind: input, shape index: {}]
  %s4 = inlined_call_operand.vmem [shape: f32[1,128], index: 4, kind: input, shape index: {}]
  %s5 = inlined_call_operand.hbm [shape: f32[16,128], index: 5, kind: output, shape index: {0}]
  %s6 = inlined_call_operand.hbm [shape: f32[16,16], index: 6, kind: output, shape index: {1}]
  %7 = xla_tuple %s5, %s6
  %s8 = sld [smem:[#allocation0]]
  $region61: #{sdne_forward.1} parent=0
    _
  %s10 = ssub.s32 1, %s8
  %s11 = scalar_select 0, %s10, %s8
  $region1: #{sdne_forward.1} parent=0
    #allocation2 [shape = 'u8[8192]{0}', space=vmem, size = 0x2000, scoped, tag = 'output window, operand 0']
    #allocation3 [shape = 's32[2]{0}', space=sflag, size = 0x8, scoped, tag = 'scoped memory for sdne_forward.1']
    #allocation4 [shape = 'u8[8192]{0}', space=vmem, size = 0x2000, scoped, tag = 'output window, operand 1']
    #allocation5 [shape = 's32[2]{0}', space=sflag, size = 0x8, scoped, tag = 'scoped memory for sdne_forward.1']
    %12 = vsyncpa [#allocation3], 0
    %s13 = scalar_lea.sflag [#allocation3], 1
    %14 = vsyncpa %s13, 0
    %15 = vsyncpa [#allocation5], 0
    %s16 = scalar_lea.sflag [#allocation5], 1
    %17 = vsyncpa %s16, 0
    loop: start=0, step=1, limit=4
    $region2: #{sdne_forward.1} parent=1 // loop_pre_header
      _
    $region3: #{sdne_forward.1} parent=1 // loop_header
      %s19 = sphi 0, %s23
      %p20 = scmp.ge.s32.totalorder %s19, 4
      %s29 = sphi 0, %s31
      %s32 = sphi 0, %s29
      %s33 = sphi 0, %s32
      %s49 = sphi 0, %s33
      %s53 = sphi 0, %s53
      %s55 = sphi 0, %s53
      %s56 = sphi 0, %s55
      %s70 = sphi 0, %s56
      %s74 = sphi 0, %s74
      %s76 = sphi 0, %s74
      %s77 = sphi 0, %s76
      %s91 = sphi 0, %s77
      %s95 = sphi 0, %s95
      %s97 = sphi 0, %s95
      %s98 = sphi 0, %s97
      %s112 = sphi 0, %s98
      %s116 = sphi 0, %s116
      %s118 = sphi 0, %s116
      %s119 = sphi 0, %s118
      %s133 = sphi 0, %s119
      %s139 = sphi 0, %s141
      %s142 = sphi 0, %s139
      %s143 = sphi 0, %s142
      %s159 = sphi 0, %s143
      %s165 = sphi 0, %s167
      %s168 = sphi 0, %s165
      %s169 = sphi 0, %s168
      %s185 = sphi 0, %s169
    $region4: #{sdne_forward.1} parent=1 // loop_header_branch
      %22 = sbr.rel (%p20) target = $region8
    $region5: #{sdne_forward.1} parent=1 // loop_body
      %s24 = ssub.s32 %s19, 1
      %s25 = ssub.s32 %s19, 2
      %s26 = sadd.s32 %s19, 1
      %s27 = ssub.s32 %s19, %s26
      %p28 = scmp.eq.s32.totalorder %s27, 0
      %s30 = sadd.s32 %s29, 1
      %s31 = scalar_select %p28, %s29, %s30
      %p34 = pneg %p28
      %p35 = scmp.eq.s32.totalorder %s19, 1
      %p36 = por %p34, %p35
      %p37 = scmp.ne.s32.totalorder %s29, %s32
      %p38 = scmp.eq.s32.totalorder %s19, 0
      %p39 = por %p37, %p38
      %p40 = scmp.ne.s32.totalorder %s29, %s32
      %p41 = scmp.eq.s32.totalorder %s24, 1
      %p42 = por %p40, %p41
      %p43 = scmp.ne.s32.totalorder %s32, %s33
      %p44 = scmp.eq.s32.totalorder %s24, 0
      %p45 = por %p43, %p44
      %p46 = scmp.ne.s32.totalorder %s32, %s33
      %p47 = scmp.eq.s32.totalorder %s25, 1
      %p48 = por %p46, %p47
      %p50 = scmp.ne.s32.totalorder %s33, %s49
      %p51 = scmp.eq.s32.totalorder %s25, 0
      %p52 = por %p50, %p51
      %s54 = sadd.s32 %s53, 1
      %p57 = scmp.eq.s32.totalorder %s19, 1
      %p58 = scmp.ne.s32.totalorder %s53, %s55
      %p59 = scmp.eq.s32.totalorder %s19, 0
      %p60 = por %p58, %p59
      %p61 = scmp.ne.s32.totalorder %s53, %s55
      %p62 = scmp.eq.s32.totalorder %s24, 1
      %p63 = por %p61, %p62
      %p64 = scmp.ne.s32.totalorder %s55, %s56
      %p65 = scmp.eq.s32.totalorder %s24, 0
      %p66 = por %p64, %p65
      %p67 = scmp.ne.s32.totalorder %s55, %s56
      %p68 = scmp.eq.s32.totalorder %s25, 1
      %p69 = por %p67, %p68
      %p71 = scmp.ne.s32.totalorder %s56, %s70
      %p72 = scmp.eq.s32.totalorder %s25, 0
      %p73 = por %p71, %p72
      %s75 = sadd.s32 %s74, 1
      %p78 = scmp.eq.s32.totalorder %s19, 1
      %p79 = scmp.ne.s32.totalorder %s74, %s76
      %p80 = scmp.eq.s32.totalorder %s19, 0
      %p81 = por %p79, %p80
      %p82 = scmp.ne.s32.totalorder %s74, %s76
      %p83 = scmp.eq.s32.totalorder %s24, 1
      %p84 = por %p82, %p83
      %p85 = scmp.ne.s32.totalorder %s76, %s77
      %p86 = scmp.eq.s32.totalorder %s24, 0
      %p87 = por %p85, %p86
      %p88 = scmp.ne.s32.totalorder %s76, %s77
      %p89 = scmp.eq.s32.totalorder %s25, 1
      %p90 = por %p88, %p89
      %p92 = scmp.ne.s32.totalorder %s77, %s91
      %p93 = scmp.eq.s32.totalorder %s25, 0
      %p94 = por %p92, %p93
      %s96 = sadd.s32 %s95, 1
      %p99 = scmp.eq.s32.totalorder %s19, 1
      %p100 = scmp.ne.s32.totalorder %s95, %s97
      %p101 = scmp.eq.s32.totalorder %s19, 0
      %p102 = por %p100, %p101
      %p103 = scmp.ne.s32.totalorder %s95, %s97
      %p104 = scmp.eq.s32.totalorder %s24, 1
      %p105 = por %p103, %p104
      %p106 = scmp.ne.s32.totalorder %s97, %s98
      %p107 = scmp.eq.s32.totalorder %s24, 0
      %p108 = por %p106, %p107
      %p109 = scmp.ne.s32.totalorder %s97, %s98
      %p110 = scmp.eq.s32.totalorder %s25, 1
      %p111 = por %p109, %p110
      %p113 = scmp.ne.s32.totalorder %s98, %s112
      %p114 = scmp.eq.s32.totalorder %s25, 0
      %p115 = por %p113, %p114
      %s117 = sadd.s32 %s116, 1
      %p120 = scmp.eq.s32.totalorder %s19, 1
      %p121 = scmp.ne.s32.totalorder %s116, %s118
      %p122 = scmp.eq.s32.totalorder %s19, 0
      %p123 = por %p121, %p122
      %p124 = scmp.ne.s32.totalorder %s116, %s118
      %p125 = scmp.eq.s32.totalorder %s24, 1
      %p126 = por %p124, %p125
      %p127 = scmp.ne.s32.totalorder %s118, %s119
      %p128 = scmp.eq.s32.totalorder %s24, 0
      %p129 = por %p127, %p128
      %p130 = scmp.ne.s32.totalorder %s118, %s119
      %p131 = scmp.eq.s32.totalorder %s25, 1
      %p132 = por %p130, %p131
      %p134 = scmp.ne.s32.totalorder %s119, %s133
      %p135 = scmp.eq.s32.totalorder %s25, 0
      %p136 = por %p134, %p135
      %s137 = ssub.s32 %s19, %s26
      %p138 = scmp.eq.s32.totalorder %s137, 0
      %s140 = sadd.s32 %s139, 1
      %s141 = scalar_select %p138, %s139, %s140
      %p144 = pneg %p138
      %p145 = scmp.eq.s32.totalorder %s19, 1
      %p146 = por %p144, %p145
      %p147 = scmp.ne.s32.totalorder %s139, %s142
      %p148 = scmp.eq.s32.totalorder %s19, 0
      %p149 = por %p147, %p148
      %p150 = scmp.ne.s32.totalorder %s139, %s142
      %p151 = scmp.eq.s32.totalorder %s24, 1
      %p152 = por %p150, %p151
      %p153 = scmp.ne.s32.totalorder %s142, %s143
      %p154 = scmp.eq.s32.totalorder %s24, 0
      %p155 = por %p153, %p154
      %p156 = scmp.ne.s32.totalorder %s142, %s143
      %p157 = scmp.eq.s32.totalorder %s25, 1
      %p158 = por %p156, %p157
      %p160 = scmp.ne.s32.totalorder %s143, %s159
      %p161 = scmp.eq.s32.totalorder %s25, 0
      %p162 = por %p160, %p161
      %s163 = ssub.s32 %s19, %s26
      %p164 = scmp.eq.s32.totalorder %s163, 0
      %s166 = sadd.s32 %s165, 1
      %s167 = scalar_select %p164, %s165, %s166
      %p170 = pneg %p164
      %p171 = scmp.eq.s32.totalorder %s19, 1
      %p172 = por %p170, %p171
      %p173 = scmp.ne.s32.totalorder %s165, %s168
      %p174 = scmp.eq.s32.totalorder %s19, 0
      %p175 = por %p173, %p174
      %p176 = scmp.ne.s32.totalorder %s165, %s168
      %p177 = scmp.eq.s32.totalorder %s24, 1
      %p178 = por %p176, %p177
      %p179 = scmp.ne.s32.totalorder %s168, %s169
      %p180 = scmp.eq.s32.totalorder %s24, 0
      %p181 = por %p179, %p180
      %p182 = scmp.ne.s32.totalorder %s168, %s169
      %p183 = scmp.eq.s32.totalorder %s25, 1
      %p184 = por %p182, %p183
      %p186 = scmp.ne.s32.totalorder %s169, %s185
      %p187 = scmp.eq.s32.totalorder %s25, 0
      %p188 = por %p186, %p187
      %p189 = scmp.le.s32.totalorder 1, %s19
      %p190 = scmp.lt.s32.totalorder %s19, 3
      %p191 = pnand %p189, %p190
      %p192 = pneg %p191
      // Predicated region
      $region9: #{sdne_forward.1} parent=5 // pred_check
        _
      $region10: #{sdne_forward.1} parent=5 // pred_check_branch
        %194 = sbr.rel (%p191) target = $region12
      $region11: #{sdne_forward.1} parent=5 // pred_region
        %s195 = ssub.s32 %s19, 1
        // Predicated region
        $region13: #{sdne_forward.1} parent=11 // pred_check
          %p196 = pneg %p66
        $region14: #{sdne_forward.1} parent=11 // pred_check_branch
          %198 = sbr.rel (%p196) target = $region16
        $region15: #{sdne_forward.1} parent=11 // pred_region
          _
        $region16: #{sdne_forward.1} parent=11 // pred_fallthru
          _
        // Predicated region
        $region17: #{sdne_forward.1} parent=11 // pred_check
          %p199 = pneg %p87
        $region18: #{sdne_forward.1} parent=11 // pred_check_branch
          %201 = sbr.rel (%p199) target = $region20
        $region19: #{sdne_forward.1} parent=11 // pred_region
          _
        $region20: #{sdne_forward.1} parent=11 // pred_fallthru
          _
        // Predicated region
        $region21: #{sdne_forward.1} parent=11 // pred_check
          %p202 = pneg %p108
        $region22: #{sdne_forward.1} parent=11 // pred_check_branch
          %204 = sbr.rel (%p202) target = $region24
        $region23: #{sdne_forward.1} parent=11 // pred_region
          _
        $region24: #{sdne_forward.1} parent=11 // pred_fallthru
          _
        // Predicated region
        $region25: #{sdne_forward.1} parent=11 // pred_check
          %p205 = pneg %p129
        $region26: #{sdne_forward.1} parent=11 // pred_check_branch
          %207 = sbr.rel (%p205) target = $region28
        $region27: #{sdne_forward.1} parent=11 // pred_region
          _
        $region28: #{sdne_forward.1} parent=11 // pred_fallthru
          _
      $region12: #{sdne_forward.1} parent=5 // pred_fallthru
        _
      %p208 = scmp.lt.s32.totalorder %s19, 2
      // Predicated region
      $region29: #{sdne_forward.1} parent=5 // pred_check
        %p209 = pneg %p208
      $region30: #{sdne_forward.1} parent=5 // pred_check_branch
        %211 = sbr.rel (%p209) target = $region32
      $region31: #{sdne_forward.1} parent=5 // pred_region
        // Predicated region
        $region33: #{sdne_forward.1} parent=31 // pred_check
          %p212 = pneg %p39
        $region34: #{sdne_forward.1} parent=31 // pred_check_branch
          %214 = sbr.rel (%p212) target = $region36
        $region35: #{sdne_forward.1} parent=31 // pred_region
          %p215 = scmp.lt.s32.totalorder %s19, 1
          %s216 = scalar_select %p215, %s19, 1
          %s217 = smul.addr %s216, 8
          %s218 = scalar_lea.vmem %s0, %s217
        $region36: #{sdne_forward.1} parent=31 // pred_fallthru
          _
      $region32: #{sdne_forward.1} parent=5 // pred_fallthru
        _
      %p219 = scmp.le.s32.totalorder 1, %s19
      %p220 = scmp.lt.s32.totalorder %s19, 3
      %p221 = pnand %p219, %p220
      %p222 = pneg %p221
      // Predicated region
      $region37: #{sdne_forward.1} parent=5 // pred_check
        _
      $region38: #{sdne_forward.1} parent=5 // pred_check_branch
        %224 = sbr.rel (%p221) target = $region40
      $region39: #{sdne_forward.1} parent=5 // pred_region
        %s225 = ssub.s32 %s19, 1
        %p226 = scmp.lt.s32.totalorder %s24, 1
        %s227 = scalar_select %p226, %s24, 1
        %s228 = smul.addr %s227, 8
        %s229 = scalar_lea.vmem %s0, %s228
        %p230 = pneg %p45
        %p231 = pneg %p42
        %p232 = pneg %p66
        %p233 = pneg %p63
        %p234 = pneg %p87
        %p235 = pneg %p84
        %p236 = pneg %p108
        %p237 = pneg %p105
        %p238 = pneg %p129
        %p239 = pneg %p126
        %p240 = pneg %p155
        %p241 = pneg %p152
        %s242 = sand.u32 %s142, 1
        %s243 = scalar_lea.sflag [#allocation3], %s242
        %s244 = sand.u32 %s142, 1
        %s245 = smul.addr %s244, 8
        %s246 = scalar_lea.vmem [#allocation2], %s245
        %p247 = pneg %p181
        %p248 = pneg %p178
        %s249 = sand.u32 %s168, 1
        %s250 = scalar_lea.sflag [#allocation5], %s249
        %s251 = sand.u32 %s168, 1
        %s252 = smul.addr %s251, 8
        %s253 = scalar_lea.vmem [#allocation4], %s252
        %p254 = scmp.lt.s32.totalorder %s24, 1
        %s255 = scalar_select %p254, %s24, 1
        %s256 = smul.addr %s255, 8
        %s257 = scalar_lea.vmem %s0, %s256
        %v258 = vld [vmem:[%s257] sm:$0xff]
        %v259 = vld [vmem:[%s1] sm:$0xff]
        %v260 = vld [vmem:[%s1 + $0x8] sm:$0xff]
        %v261 = vld [vmem:[%s1 + $0x10] sm:$0xff]
        %v262 = vld [vmem:[%s1 + $0x18] sm:$0xff]
        %v263 = vld [vmem:[%s1 + $0x20] sm:$0xff]
        %v264 = vld [vmem:[%s1 + $0x28] sm:$0xff]
        %v265 = vld [vmem:[%s1 + $0x30] sm:$0xff]
        %v266 = vld [vmem:[%s1 + $0x38] sm:$0xff]
        %v267 = vld [vmem:[%s1 + $0x40] sm:$0xff]
        %v268 = vld [vmem:[%s1 + $0x48] sm:$0xff]
        %v269 = vld [vmem:[%s1 + $0x50] sm:$0xff]
        %v270 = vld [vmem:[%s1 + $0x58] sm:$0xff]
        %v271 = vld [vmem:[%s1 + $0x60] sm:$0xff]
        %v272 = vld [vmem:[%s1 + $0x68] sm:$0xff]
        %v273 = vld [vmem:[%s1 + $0x70] sm:$0xff]
        %v274 = vld [vmem:[%s1 + $0x78] sm:$0xff]
        %v275 = vld [vmem:[%s2] sm:$0x1]
        %v277 = vlaneseq
        %v278 = vshrl.u32 %v277, 7
        %v279 = vsub.s32 0, %v278
        %v280 = vrot.slane %v275, %v279
        %282 = vmatprep.subr.mxu0 0.0
        %283 = vmatpush1.msra.mxu0 %v259
        %284 = vmatprep.subr.mxu0 0.0
        %285 = vmatpush1.msra.mxu0 %v260
        %286 = vmatprep.subr.mxu0 0.0
        %287 = vmatpush1.msra.mxu0 %v261
        %288 = vmatprep.subr.mxu0 0.0
        %289 = vmatpush1.msra.mxu0 %v262
        %290 = vmatprep.subr.mxu0 0.0
        %291 = vmatpush1.msra.mxu0 %v263
        %292 = vmatprep.subr.mxu0 0.0
        %293 = vmatpush1.msra.mxu0 %v264
        %294 = vmatprep.subr.mxu0 0.0
        %295 = vmatpush1.msra.mxu0 %v265
        %296 = vmatprep.subr.mxu0 0.0
        %297 = vmatpush1.msra.mxu0 %v266
        %298 = vmatprep.subr.mxu0 0.0
        %299 = vmatpush1.msra.mxu0 %v267
        %300 = vmatprep.subr.mxu0 0.0
        %301 = vmatpush1.msra.mxu0 %v268
        %302 = vmatprep.subr.mxu0 0.0
        %303 = vmatpush1.msra.mxu0 %v269
        %304 = vmatprep.subr.mxu0 0.0
        %305 = vmatpush1.msra.mxu0 %v270
        %306 = vmatprep.subr.mxu0 0.0
        %307 = vmatpush1.msra.mxu0 %v271
        %308 = vmatprep.subr.mxu0 0.0
        %309 = vmatpush1.msra.mxu0 %v272
        %310 = vmatprep.subr.mxu0 0.0
        %311 = vmatpush1.msra.mxu0 %v273
        %312 = vmatprep.subr.mxu0 0.0
        %313 = vmatpush1.msra.mxu0 %v274
        %314 = vmatprep.subr.mxu0 0.0
        %315 = vmatpush1.msra.mxu0 0.0
        %316 = vmatprep.subr.mxu0 0.0
        %317 = vmatpush1.msra.mxu0 0.0
        %318 = vmatprep.subr.mxu0 0.0
        %319 = vmatpush1.msra.mxu0 0.0
        %320 = vmatprep.subr.mxu0 0.0
        %321 = vmatpush1.msra.mxu0 0.0
        %322 = vmatprep.subr.mxu0 0.0
        %323 = vmatpush1.msra.mxu0 0.0
        %324 = vmatprep.subr.mxu0 0.0
        %325 = vmatpush1.msra.mxu0 0.0
        %326 = vmatprep.subr.mxu0 0.0
        %327 = vmatpush1.msra.mxu0 0.0
        %328 = vmatprep.subr.mxu0 0.0
        %329 = vmatpush1.msra.mxu0 0.0
        %330 = vmatprep.subr.mxu0 0.0
        %331 = vmatpush1.msra.mxu0 0.0
        %332 = vmatprep.subr.mxu0 0.0
        %333 = vmatpush1.msra.mxu0 0.0
        %334 = vmatprep.subr.mxu0 0.0
        %335 = vmatpush1.msra.mxu0 0.0
        %336 = vmatprep.subr.mxu0 0.0
        %337 = vmatpush1.msra.mxu0 0.0
        %338 = vmatprep.subr.mxu0 0.0
        %339 = vmatpush1.msra.mxu0 0.0
        %340 = vmatprep.subr.mxu0 0.0
        %341 = vmatpush1.msra.mxu0 0.0
        %342 = vmatprep.subr.mxu0 0.0
        %343 = vmatpush1.msra.mxu0 0.0
        %344 = vmatprep.subr.mxu0 0.0
        %345 = vmatpush1.msra.mxu0 0.0
        %346 = vmatprep.mubr.f32.mxu0 0.0
        %347 = vmatmul.mubr.f32.gmra.mrb[0].mxu0 %v258
        %v348 = vpop.f32.mrb[0].mxu0
        %v349 = vadd.f32 %v280, %v348
        %v350 = vpop.f32.mrb[0].mxu0
        %351 = vdwg.mxu0
        %vm352 = vcmask 130048
        %353 = vst.msk [vmem:[%s253] sm:$0xff] %vm352, %v349
        %v354 = vld [vmem:[%s3] sm:$0xff]
        %v355 = vld [vmem:[%s3 + $0x8] sm:$0xff]
        %v356 = vld [vmem:[%s4] sm:$0x1]
        %v358 = vlaneseq
        %v359 = vshrl.u32 %v358, 7
        %v360 = vsub.s32 0, %v359
        %v361 = vrot.slane %v356, %v360
        %v364 = vsel %vm352, %v349, 0
        %366 = vmatprep.subr.mxu0 0.0
        %367 = vmatpush1.msra.mxu0 %v354
        %368 = vmatprep.subr.mxu0 0.0
        %369 = vmatpush1.msra.mxu0 %v355
        %370 = vmatprep.subr.mxu0 0.0
        %371 = vmatpush1.msra.mxu0 0.0
        %372 = vmatprep.subr.mxu0 0.0
        %373 = vmatpush1.msra.mxu0 0.0
        %374 = vmatprep.subr.mxu0 0.0
        %375 = vmatpush1.msra.mxu0 0.0
        %376 = vmatprep.subr.mxu0 0.0
        %377 = vmatpush1.msra.mxu0 0.0
        %378 = vmatprep.subr.mxu0 0.0
        %379 = vmatpush1.msra.mxu0 0.0
        %380 = vmatprep.subr.mxu0 0.0
        %381 = vmatpush1.msra.mxu0 0.0
        %382 = vmatprep.subr.mxu0 0.0
        %383 = vmatpush1.msra.mxu0 0.0
        %384 = vmatprep.subr.mxu0 0.0
        %385 = vmatpush1.msra.mxu0 0.0
        %386 = vmatprep.subr.mxu0 0.0
        %387 = vmatpush1.msra.mxu0 0.0
        %388 = vmatprep.subr.mxu0 0.0
        %389 = vmatpush1.msra.mxu0 0.0
        %390 = vmatprep.subr.mxu0 0.0
        %391 = vmatpush1.msra.mxu0 0.0
        %392 = vmatprep.subr.mxu0 0.0
        %393 = vmatpush1.msra.mxu0 0.0
        %394 = vmatprep.subr.mxu0 0.0
        %395 = vmatpush1.msra.mxu0 0.0
        %396 = vmatprep.subr.mxu0 0.0
        %397 = vmatpush1.msra.mxu0 0.0
        %398 = vmatprep.subr.mxu0 0.0
        %399 = vmatpush1.msra.mxu0 0.0
        %400 = vmatprep.subr.mxu0 0.0
        %401 = vmatpush1.msra.mxu0 0.0
        %402 = vmatprep.subr.mxu0 0.0
        %403 = vmatpush1.msra.mxu0 0.0
        %404 = vmatprep.subr.mxu0 0.0
        %405 = vmatpush1.msra.mxu0 0.0
        %406 = vmatprep.subr.mxu0 0.0
        %407 = vmatpush1.msra.mxu0 0.0
        %408 = vmatprep.subr.mxu0 0.0
        %409 = vmatpush1.msra.mxu0 0.0
        %410 = vmatprep.subr.mxu0 0.0
        %411 = vmatpush1.msra.mxu0 0.0
        %412 = vmatprep.subr.mxu0 0.0
        %413 = vmatpush1.msra.mxu0 0.0
        %414 = vmatprep.subr.mxu0 0.0
        %415 = vmatpush1.msra.mxu0 0.0
        %416 = vmatprep.subr.mxu0 0.0
        %417 = vmatpush1.msra.mxu0 0.0
        %418 = vmatprep.subr.mxu0 0.0
        %419 = vmatpush1.msra.mxu0 0.0
        %420 = vmatprep.subr.mxu0 0.0
        %421 = vmatpush1.msra.mxu0 0.0
        %422 = vmatprep.subr.mxu0 0.0
        %423 = vmatpush1.msra.mxu0 0.0
        %424 = vmatprep.subr.mxu0 0.0
        %425 = vmatpush1.msra.mxu0 0.0
        %426 = vmatprep.subr.mxu0 0.0
        %427 = vmatpush1.msra.mxu0 0.0
        %428 = vmatprep.subr.mxu0 0.0
        %429 = vmatpush1.msra.mxu0 0.0
        %430 = vmatprep.mubr.f32.mxu0 0.0
        %431 = vmatmul.mubr.f32.gmra.mrb[0].mxu0 %v364
        %v432 = vpop.f32.mrb[0].mxu0
        %v433 = vadd.f32 %v361, %v432
        %v434 = vpop.f32.mrb[0].mxu0
        %435 = vdwg.mxu0
        %v436 = vsub.f32 %v258, %v433
        %437 = vst [vmem:[%s246] sm:$0xff] %v436
        %s438 = sand.u32 %s142, 1
        %s439 = scalar_lea.sflag [#allocation3], %s438
        %s440 = sand.u32 %s142, 1
        %s441 = smul.addr %s440, 8
        %s442 = scalar_lea.vmem [#allocation2], %s441
        %s443 = sand.u32 %s168, 1
        %s444 = scalar_lea.sflag [#allocation5], %s443
        %s445 = sand.u32 %s168, 1
        %s446 = smul.addr %s445, 8
        %s447 = scalar_lea.vmem [#allocation4], %s446
        // Predicated region
        $region41: #{sdne_forward.1} parent=39 // pred_check
          %p448 = pneg %p152
        $region42: #{sdne_forward.1} parent=39 // pred_check_branch
          %450 = sbr.rel (%p448) target = $region44
        $region43: #{sdne_forward.1} parent=39 // pred_region
          %s452 = ssub.s32 128, 128
          %453 = vsyncadd %s439, %s452
          %s454 = smul.addr %s24, 128
          %s455 = scalar_lea.hbm %s5, %s454
          %s457 = sshll.u32 %s442, 4
          %s458 = int_to_ptr.vmem [resolvable:$true] %s457
          %460 = dma.vmem_to_hbm [thread:$0]  %s458, 128, %s455, %s439
        $region44: #{sdne_forward.1} parent=39 // pred_fallthru
          _
        // Predicated region
        $region45: #{sdne_forward.1} parent=39 // pred_check
          %p461 = pneg %p178
        $region46: #{sdne_forward.1} parent=39 // pred_check_branch
          %463 = sbr.rel (%p461) target = $region48
        $region47: #{sdne_forward.1} parent=39 // pred_region
          %s465 = ssub.s32 128, 128
          %466 = vsyncadd %s444, %s465
          %s467 = smul.addr %s24, 128
          %s468 = scalar_lea.hbm %s6, %s467
          %s470 = sshll.u32 %s447, 4
          %s471 = int_to_ptr.vmem [resolvable:$true] %s470
          %473 = dma.vmem_to_hbm [thread:$0]  %s471, 128, %s468, %s444
        $region48: #{sdne_forward.1} parent=39 // pred_fallthru
          _
      $region40: #{sdne_forward.1} parent=5 // pred_fallthru
        _
      %p474 = scmp.le.s32.totalorder 2, %s19
      // Predicated region
      $region49: #{sdne_forward.1} parent=5 // pred_check
        %p475 = pneg %p474
      $region50: #{sdne_forward.1} parent=5 // pred_check_branch
        %477 = sbr.rel (%p475) target = $region52
      $region51: #{sdne_forward.1} parent=5 // pred_region
        %s478 = ssub.s32 %s19, 2
        // Predicated region
        $region53: #{sdne_forward.1} parent=51 // pred_check
          %p479 = pneg %p158
        $region54: #{sdne_forward.1} parent=51 // pred_check_branch
          %481 = sbr.rel (%p479) target = $region56
        $region55: #{sdne_forward.1} parent=51 // pred_region
          %s482 = sand.u32 %s143, 1
          %s483 = scalar_lea.sflag [#allocation3], %s482
          %s484 = sand.u32 %s143, 1
          %s485 = smul.addr %s484, 8
          %s486 = scalar_lea.vmem [#allocation2], %s485
          %487 = dma.done %s483, 128
        $region56: #{sdne_forward.1} parent=51 // pred_fallthru
          _
        // Predicated region
        $region57: #{sdne_forward.1} parent=51 // pred_check
          %p488 = pneg %p184
        $region58: #{sdne_forward.1} parent=51 // pred_check_branch
          %490 = sbr.rel (%p488) target = $region60
        $region59: #{sdne_forward.1} parent=51 // pred_region
          %s491 = sand.u32 %s169, 1
          %s492 = scalar_lea.sflag [#allocation5], %s491
          %s493 = sand.u32 %s169, 1
          %s494 = smul.addr %s493, 8
          %s495 = scalar_lea.vmem [#allocation4], %s494
          %496 = dma.done %s492, 128
        $region60: #{sdne_forward.1} parent=51 // pred_fallthru
          _
      $region52: #{sdne_forward.1} parent=5 // pred_fallthru
        _
    $region6: #{sdne_forward.1} parent=1 // loop_footer
      %s23 = sadd.s32 1, %s19
    $region7: #{sdne_forward.1} parent=1 // loop_footer_branch
      %18 = sbr.rel target = $region3
    $region8: #{sdne_forward.1} parent=1 // loop_exit
      _
    %497 = vsyncpa [#allocation3], 1
    %s498 = scalar_lea.sflag [#allocation3], 1
    %499 = vsyncpa %s498, 1
    %500 = vsyncpa [#allocation5], 1
    %s501 = scalar_lea.sflag [#allocation5], 1
    %502 = vsyncpa %s501, 1

</llo_original>
